<compile_context>
chip_gen: v7x
topology: tpu7x:2x2x1
jax: 0.10.0
libtpu: 0.0.40
codegen_flags: <defaults>
</compile_context>

<pallas_src>
import jax
import jax.numpy as jnp
from jax.experimental import pallas as pl
from jax.experimental.pallas import tpu as pltpu


def _identity_kernel(x_ref, o_ref):
    # Pure pass-through: load the current VMEM tile and store it to the output tile.
    o_ref[...] = x_ref[...]


_LANE = 128
_ROW_TILE_CAP = 1024              # >1024 rows gives no measured roofline gain
_COL_TILE_CAP = 2048              # lane-dense column tile cap (keeps VMEM bounded for wide C)
_PER_BUFFER_BYTES = 4 * 1024 * 1024   # 4 pipelined buffers -> <= 16 MiB total footprint
_VMEM_LIMIT_BYTES = 32 * 1024 * 1024  # safe on v5e/v6e (128 MiB phys) and v7x (64 MiB phys)


def _choose_2d_shape(n, orig_last):
    """Pick a lane-dense (rows, cols) factorization of n elements when possible."""
    if n % _LANE == 0:
        # Prefer a wide, 128-multiple trailing dim -> unmasked full-lane stores.
        for c in (2048, 1024, 512, 256, 128):
            if n % c == 0:
                return n // c, c
    # Fallback: keep the original trailing dim (may be lane-sparse but correct).
    c = max(orig_last, 1)
    if n % c != 0:
        c = n
    return n // c, c


def output_layer_forward(x: jnp.ndarray) -> jnp.ndarray:
    """Pallas implementation of OutputLayer.forward (identity)."""
    orig_shape = x.shape
    if x.size == 0:
        return x

    n = x.size
    orig_last = x.shape[-1] if x.ndim >= 1 else 1
    R, C = _choose_2d_shape(n, orig_last)
    x2 = x.reshape(R, C)

    dtype_bytes = x2.dtype.itemsize

    # Column tile: lane-aligned (multiple of 128) or full extent (always legal).
    if C % _LANE == 0:
        tile_c = min(C, _COL_TILE_CAP)
    else:
        tile_c = C

    # Row tile: multiple of 8 (or full extent), bytes-capped per pipelined buffer.
    bytes_per_row = max(1, tile_c * dtype_bytes)
    max_rows = max(1, _PER_BUFFER_BYTES // bytes_per_row)
    if R <= max_rows:
        tile_r = R                               # whole row extent fits one budgeted block
    else:
        tile_r = min(_ROW_TILE_CAP, max_rows)
        tile_r = max(8, (tile_r // 8) * 8)       # keep the (8, 128) sublane constraint

    # Real grid in both dims; Pallas masks the ragged last block, so no grid=1 fallback.
    grid = (pl.cdiv(R, tile_r), pl.cdiv(C, tile_c))

    out2 = pl.pallas_call(
        _identity_kernel,
        out_shape=jax.ShapeDtypeStruct((R, C), x2.dtype),
        grid_spec=pltpu.PrefetchScalarGridSpec(
            num_scalar_prefetch=0,
            grid=grid,
            in_specs=[pl.BlockSpec((tile_r, tile_c), lambda i, j: (i, j))],
            out_specs=pl.BlockSpec((tile_r, tile_c), lambda i, j: (i, j)),
        ),
        compiler_params=pltpu.CompilerParams(
            # Both axes independent -> megacore sharding on v7x; near-zero cost on v5e/v6e.
            dimension_semantics=("parallel", "parallel"),
            vmem_limit_bytes=_VMEM_LIMIT_BYTES,
        ),
        # Alias the output HBM buffer onto the input: with buffer donation upstream the
        # identity costs ~nothing; without donation XLA inserts a copy (never worse).
        input_output_aliases={0: 0},
    )(x2)

    return out2.reshape(orig_shape)


if __name__ == "__main__":
    key = jax.random.PRNGKey(0)
    # Small NCHW-style input consistent with a typical forward: batch=2, channels=4, 16x16.
    x = jax.random.normal(key, (2, 4, 16, 16), dtype=jnp.float32)

    y = output_layer_forward(x)
    y = jax.block_until_ready(y)

    assert y.shape == x.shape
    assert y.dtype == x.dtype
    assert jnp.array_equal(y, x)

    # Also exercise a non-divisible / lane-sparse shape to cover the ragged-grid path.
    x2 = jax.random.normal(jax.random.PRNGKey(1), (3, 5, 7), dtype=jnp.bfloat16)
    y2 = jax.block_until_ready(output_layer_forward(x2))
    assert y2.shape == x2.shape and y2.dtype == x2.dtype
    assert jnp.array_equal(y2, x2)

    print("KERNEL_OK")
</pallas_src>

<mosaic_0001>
module attributes {stable_mosaic.version = 11 : i64} {
  func.func @_identity_kernel(%arg0: i32, %arg1: i32, %arg2: memref<1x2048xf32, #tpu.memory_space<vmem>>, %arg3: memref<1x2048xf32, #tpu.memory_space<vmem>>) attributes {dimension_semantics = [#tpu.dimension_semantics<parallel>, #tpu.dimension_semantics<parallel>], iteration_bounds = array<i64: 1, 1>, scalar_prefetch = 0 : i64, scratch_operands = 0 : i64, tpu.core_type = #tpu.core_type<tc>, window_params = [{transform_indices = @transform_0, window_bounds = array<i64: 1, 2048>}, {transform_indices = @transform_1, window_bounds = array<i64: 1, 2048>}]} {
    %c0 = arith.constant 0 : index
    %c0_0 = arith.constant 0 : index
    %0 = vector.load %arg2[%c0, %c0_0] : memref<1x2048xf32, #tpu.memory_space<vmem>>, vector<1x2048xf32>
    %c0_1 = arith.constant 0 : index
    %c0_2 = arith.constant 0 : index
    %1 = vector.load %arg3[%c0_1, %c0_2] : memref<1x2048xf32, #tpu.memory_space<vmem>>, vector<1x2048xf32>
    tpu.vector_store %arg3[%c0_1, %c0_2], %0 {strides = array<i32>} : memref<1x2048xf32, #tpu.memory_space<vmem>>, vector<1x2048xf32>,
    return
  }
  func.func @transform_0(%arg0: i32, %arg1: i32) -> (i32, i32) {
    %c0_i32 = arith.constant 0 : i32
    return %arg0, %arg1 : i32, i32
  }
  func.func @transform_1(%arg0: i32, %arg1: i32) -> (i32, i32) {
    %c0_i32 = arith.constant 0 : i32
    return %arg0, %arg1 : i32, i32
  }
}

</mosaic_0001>

<llo_original>
// kernel: tpu_custom_call.1
$region0: #{tpu_custom_call.1}
  #allocation0 [shape = 'u32[]', space=smem, size = 0x4, offset = 0x4, fixed_abs, tag = 'smem constant byte address 0x4 - core index']
  #allocation1 [shape = 'u32[144,128]{1,0:T(1,128)}', space=vmem, size = 0x12000, scoped, tag = 'internal scratch']
  %s0 = inlined_call_operand.hbm [shape: f32[1,2048], index: 0, kind: input, shape index: {}, may-alias: {0,1}]
  %s1 = inlined_call_operand.hbm [shape: f32[1,2048], index: 1, kind: output, shape index: {}, may-alias: {0,1}]
  %s2 = sld [smem:[#allocation0]]
  $region18: #{tpu_custom_call.1} parent=0
    _
  %s4 = ssub.s32 1, %s2
  %s5 = scalar_select 0, %s4, %s2
  $region1: #{tpu_custom_call.1} parent=0
    #allocation2 [shape = 'u8[8192]{0}', space=vmem, size = 0x2000, scoped, tag = 'input window, operand 0, single buffered']
    #allocation3 [shape = 's32[1]{0}', space=sflag, size = 0x4, scoped, tag = 'scoped memory for tpu_custom_call.1']
    #allocation4 [shape = 's32[1]{0}', space=sflag, size = 0x4, scoped, tag = 'scoped memory for tpu_custom_call.1']
    #allocation5 [shape = 'u8[8192]{0}', space=vmem, size = 0x2000, scoped, tag = 'output window, operand 0, single buffered']
    %6 = vsyncpa [#allocation3], 0
    %7 = vsyncpa [#allocation4], 0
    // Predicated region
    $region2: #{tpu_custom_call.1} parent=1 // pred_check
      _
    $region3: #{tpu_custom_call.1} parent=1 // pred_check_branch
      %9 = sbr.rel (0) target = $region5
    $region4: #{tpu_custom_call.1} parent=1 // pred_region
      %s11 = ssub.s32 256, 256
      %12 = vsyncadd [#allocation3], %s11
      %s14 = sshll.u32 [#allocation2], 4
      %s15 = int_to_ptr.vmem [resolvable:$true] %s14
      %17 = dma.hbm_to_vmem [thread:$0]  %s0, 256, %s15, [#allocation3]
    $region5: #{tpu_custom_call.1} parent=1 // pred_fallthru
      _
    // Predicated region
    $region6: #{tpu_custom_call.1} parent=1 // pred_check
      _
    $region7: #{tpu_custom_call.1} parent=1 // pred_check_branch
      %19 = sbr.rel (0) target = $region9
    $region8: #{tpu_custom_call.1} parent=1 // pred_region
      %20 = dma.done [#allocation3], 256
    $region9: #{tpu_custom_call.1} parent=1 // pred_fallthru
      _
    %v21 = vld [vmem:[#allocation2] sm:$0xff]
    %v22 = vld [vmem:[#allocation2 + $0x8] sm:$0xff]
    %23 = vst [vmem:[#allocation5] sm:$0xff] %v21
    %24 = vst [vmem:[#allocation5 + $0x8] sm:$0xff] %v22
    // Predicated region
    $region10: #{tpu_custom_call.1} parent=1 // pred_check
      _
    $region11: #{tpu_custom_call.1} parent=1 // pred_check_branch
      %26 = sbr.rel (0) target = $region13
    $region12: #{tpu_custom_call.1} parent=1 // pred_region
      %s28 = ssub.s32 256, 256
      %29 = vsyncadd [#allocation4], %s28
      %s31 = sshll.u32 [#allocation5], 4
      %s32 = int_to_ptr.vmem [resolvable:$true] %s31
      %34 = dma.vmem_to_hbm [thread:$0]  %s32, 256, %s1, [#allocation4]
    $region13: #{tpu_custom_call.1} parent=1 // pred_fallthru
      _
    // Predicated region
    $region14: #{tpu_custom_call.1} parent=1 // pred_check
      _
    $region15: #{tpu_custom_call.1} parent=1 // pred_check_branch
      %36 = sbr.rel (0) target = $region17
    $region16: #{tpu_custom_call.1} parent=1 // pred_region
      %37 = dma.done [#allocation4], 256
    $region17: #{tpu_custom_call.1} parent=1 // pred_fallthru
      _
    %38 = vsyncpa [#allocation3], 1
    %39 = vsyncpa [#allocation4], 1

</llo_original>
